<compile_context>
chip_gen: v5e
topology: v5e:2x2
jax: 0.10.0
libtpu: 0.0.40
codegen_flags: <defaults>
</compile_context>

<pallas_src>
import jax
import jax.numpy as jnp
from jax.experimental import pallas as pl
from jax.experimental.pallas import tpu as pltpu


def _squeeze_block_kernel(x_ref, w1t_ref, w2t_ref, o_ref):
    """x_ref/o_ref: (Bt, C, HW).  w1t_ref: (C, C4) = W1.T.  w2t_ref: (C4, C) = W2.T."""
    hw = x_ref.shape[-1]

    # Global average pool over the spatial (lane) axis, accumulated in f32
    # regardless of the activation dtype (keeps bf16 inputs accurate).
    pooled = jnp.sum(x_ref[...], axis=-1, dtype=jnp.float32) * (1.0 / hw)   # (Bt, C)

    # FC1 (no bias) + ReLU on the MXU: (Bt, C) @ (C, C4) -> (Bt, C4).
    hidden = jnp.dot(pooled, w1t_ref[...].astype(jnp.float32),
                     preferred_element_type=jnp.float32)
    hidden = jnp.maximum(hidden, 0.0)

    # FC2 (no bias) + h_sigmoid: (Bt, C4) @ (C4, C) -> (Bt, C).
    gate_pre = jnp.dot(hidden, w2t_ref[...].astype(jnp.float32),
                       preferred_element_type=jnp.float32)
    gate = jnp.clip(gate_pre + 3.0, 0.0, 6.0) * (1.0 / 6.0)                 # (Bt, C)

    # Channel-wise rescale: re-read the resident slab (no live f32 copy kept
    # across the kernel); gate cast to the activation dtype so the multiply
    # runs at the input width on v6e/v7x.
    o_ref[...] = (x_ref[...] * gate[:, :, None].astype(x_ref.dtype)).astype(o_ref.dtype)


def _choose_block_batch(B, C, HW, itemsize):
    """Pick samples-per-grid-step so double-buffered in+out blocks fit VMEM."""
    slab = C * HW * itemsize
    budget = 48 << 20            # v7x-safe per-TC budget (64 MiB phys, headroom)
    max_bt = max(1, budget // (4 * slab))
    bt = min(B, int(max_bt))
    if B >= 2:
        # Keep >= 2 grid steps so the parallel batch axis shards across both
        # TensorCores on v7x and the pipeline has something to overlap.
        bt = min(bt, -(-B // 2))
    return max(1, bt)


def squeeze_block(x, w1, w2):
    """Fused SE block.  x: (B, C, H, W) NCHW.  w1: (C//4, C).  w2: (C, C//4)."""
    B, C, H, W = x.shape
    HW = H * W
    C4 = w1.shape[0]
    assert w1.shape == (C4, C) and w2.shape == (C, C4)

    itemsize = jnp.dtype(x.dtype).itemsize
    bt = _choose_block_batch(B, C, HW, itemsize)
    grid = (pl.cdiv(B, bt),)

    # Metadata-only reshape (contiguous trailing dims merge): no pad, no copy.
    x3 = x.reshape(B, C, HW)
    w1_t = jnp.transpose(w1)   # (C, C4)
    w2_t = jnp.transpose(w2)   # (C4, C)
    # TODO(synk): if the enclosing graph can supply NHWC cheaply, put C on the
    # lane axis (lane-dense stores when HW < 128); with NCHW inputs an extra
    # HBM transpose pass would negate the win for this memory-bound kernel.

    w_bytes = (C * C4 + C4 * C) * jnp.dtype(w1.dtype).itemsize
    slab_bytes = bt * C * HW * itemsize
    vmem_limit = int(4 * slab_bytes + 2 * w_bytes + (4 << 20))
    vmem_limit = min(max(vmem_limit, 16 << 20), 100 << 20)

    cost = pl.CostEstimate(
        flops=2 * B * C * HW + 4 * B * C * C4,
        transcendentals=0,
        bytes_accessed=2 * B * C * HW * itemsize + 2 * w_bytes,
    )

    out = pl.pallas_call(
        _squeeze_block_kernel,
        out_shape=jax.ShapeDtypeStruct((B, C, HW), x.dtype),
        grid_spec=pltpu.PrefetchScalarGridSpec(
            num_scalar_prefetch=0,
            grid=grid,
            in_specs=[
                # Bt samples per grid step; last two block dims equal the full
                # array dims, so no (8,128) divisibility issue.
                pl.BlockSpec((bt, C, HW), lambda b: (b, 0, 0)),
                # SE weights: constant index_map -> VMEM-resident across steps.
                pl.BlockSpec((C, C4), lambda b: (0, 0)),
                pl.BlockSpec((C4, C), lambda b: (0, 0)),
            ],
            out_specs=pl.BlockSpec((bt, C, HW), lambda b: (b, 0, 0)),
        ),
        compiler_params=pltpu.CompilerParams(
            dimension_semantics=("parallel",),
            vmem_limit_bytes=vmem_limit,
        ),
        cost_estimate=cost,
    )(x3, w1_t, w2_t)
    return out.reshape(B, C, H, W)


if __name__ == "__main__":
    key = jax.random.PRNGKey(0)
    kx, k1, k2 = jax.random.split(key, 3)

    # Shapes implied by the PyTorch module: NCHW input, exp_size=C, divide=4.
    B, C, H, W = 4, 32, 8, 8
    C4 = C // 4
    x = jax.random.normal(kx, (B, C, H, W), dtype=jnp.float32) * 2.0
    w1 = jax.random.normal(k1, (C4, C), dtype=jnp.float32) * 0.5   # Linear(C -> C//4, bias=False)
    w2 = jax.random.normal(k2, (C, C4), dtype=jnp.float32) * 0.5   # Linear(C//4 -> C, bias=False)

    out = squeeze_block(x, w1, w2)
    out = jax.block_until_ready(out)

    # Pure-JAX reference of the PyTorch forward.
    pooled = jnp.mean(x.reshape(B, C, -1), axis=-1)                # (B, C)
    hidden = jnp.maximum(pooled @ w1.T, 0.0)                       # (B, C//4)
    gate = jnp.clip(hidden @ w2.T + 3.0, 0.0, 6.0) / 6.0           # (B, C)
    ref = x * gate[:, :, None, None]

    assert out.shape == x.shape and out.dtype == x.dtype
    assert jnp.allclose(out, ref, atol=1e-5, rtol=1e-5), float(jnp.max(jnp.abs(out - ref)))

    print("KERNEL_OK")
</pallas_src>

<mosaic_0001>
module attributes {stable_mosaic.version = 11 : i64} {
  func.func @_squeeze_block_kernel(%arg0: i32, %arg1: memref<2x32x64xf32, #tpu.memory_space<vmem>>, %arg2: memref<32x8xf32, #tpu.memory_space<vmem>>, %arg3: memref<8x32xf32, #tpu.memory_space<vmem>>, %arg4: memref<2x32x64xf32, #tpu.memory_space<vmem>>) attributes {dimension_semantics = [#tpu.dimension_semantics<parallel>], iteration_bounds = array<i64: 2>, scalar_prefetch = 0 : i64, scratch_operands = 0 : i64, tpu.core_type = #tpu.core_type<tc>, window_params = [{transform_indices = @transform_0, window_bounds = array<i64: 2, 32, 64>}, {pipeline_mode = #tpu.pipeline_mode<synchronous>, transform_indices = @transform_1, window_bounds = array<i64: 32, 8>}, {pipeline_mode = #tpu.pipeline_mode<synchronous>, transform_indices = @transform_2, window_bounds = array<i64: 8, 32>}, {transform_indices = @transform_3, window_bounds = array<i64: 2, 32, 64>}]} {
    %c0 = arith.constant 0 : index
    %c0_0 = arith.constant 0 : index
    %c0_1 = arith.constant 0 : index
    %0 = vector.load %arg1[%c0, %c0_0, %c0_1] : memref<2x32x64xf32, #tpu.memory_space<vmem>>, vector<2x32x64xf32>
    %cst = arith.constant dense<0.000000e+00> : vector<2x32xf32>
    %1 = vector.multi_reduction <add>, %0, %cst [2] : vector<2x32x64xf32> to vector<2x32xf32>
    %cst_2 = arith.constant 1.562500e-02 : f32
    %2 = vector.broadcast %cst_2 : f32 to vector<2x32xf32>
    %3 = arith.mulf %1, %2 : vector<2x32xf32>
    %c0_3 = arith.constant 0 : index
    %c0_4 = arith.constant 0 : index
    %4 = vector.load %arg2[%c0_3, %c0_4] : memref<32x8xf32, #tpu.memory_space<vmem>>, vector<32x8xf32>
    %cst_5 = arith.constant dense<0.000000e+00> : vector<2x8xf32>
    %5 = tpu.matmul %3, %4, %cst_5 {dimension_numbers = #tpu.dot_dimension_numbers<[1], [0], [0], [1], [0, 0, 1, 1], [], []>} : vector<2x32xf32>, vector<32x8xf32>, vector<2x8xf32> -> vector<2x8xf32>
    %cst_6 = arith.constant 0.000000e+00 : f32
    %6 = vector.broadcast %cst_6 : f32 to vector<2x8xf32>
    %7 = arith.maximumf %5, %6 : vector<2x8xf32>
    %c0_7 = arith.constant 0 : index
    %c0_8 = arith.constant 0 : index
    %8 = vector.load %arg3[%c0_7, %c0_8] : memref<8x32xf32, #tpu.memory_space<vmem>>, vector<8x32xf32>
    %cst_9 = arith.constant dense<0.000000e+00> : vector<2x32xf32>
    %9 = tpu.matmul %7, %8, %cst_9 {dimension_numbers = #tpu.dot_dimension_numbers<[1], [0], [0], [1], [0, 0, 1, 1], [], []>} : vector<2x8xf32>, vector<8x32xf32>, vector<2x32xf32> -> vector<2x32xf32>
    %cst_10 = arith.constant 3.000000e+00 : f32
    %10 = vector.broadcast %cst_10 : f32 to vector<2x32xf32>
    %11 = arith.addf %9, %10 : vector<2x32xf32>
    %cst_11 = arith.constant 0.000000e+00 : f32
    %cst_12 = arith.constant 6.000000e+00 : f32
    %12 = vector.broadcast %cst_11 : f32 to vector<2x32xf32>
    %13 = arith.maximumf %12, %11 : vector<2x32xf32>
    %14 = vector.broadcast %cst_12 : f32 to vector<2x32xf32>
    %15 = arith.minimumf %14, %13 : vector<2x32xf32>
    %cst_13 = arith.constant 0.166666672 : f32
    %16 = vector.broadcast %cst_13 : f32 to vector<2x32xf32>
    %17 = arith.mulf %15, %16 : vector<2x32xf32>
    %c0_14 = arith.constant 0 : index
    %c0_15 = arith.constant 0 : index
    %c0_16 = arith.constant 0 : index
    %18 = vector.load %arg1[%c0_14, %c0_15, %c0_16] : memref<2x32x64xf32, #tpu.memory_space<vmem>>, vector<2x32x64xf32>
    %19 = vector.shape_cast %17 : vector<2x32xf32> to vector<2x32x1xf32>
    %20 = vector.broadcast %19 : vector<2x32x1xf32> to vector<2x32x64xf32>
    %21 = arith.mulf %18, %20 : vector<2x32x64xf32>
    %c0_17 = arith.constant 0 : index
    %c0_18 = arith.constant 0 : index
    %c0_19 = arith.constant 0 : index
    %22 = vector.load %arg4[%c0_17, %c0_18, %c0_19] : memref<2x32x64xf32, #tpu.memory_space<vmem>>, vector<2x32x64xf32>
    tpu.vector_store %arg4[%c0_17, %c0_18, %c0_19], %21 {strides = array<i32>} : memref<2x32x64xf32, #tpu.memory_space<vmem>>, vector<2x32x64xf32>,
    return
  }
  func.func @transform_0(%arg0: i32) -> (i32, i32, i32) {
    %c0_i32 = arith.constant 0 : i32
    %c0_i32_0 = arith.constant 0 : i32
    %c0_i32_1 = arith.constant 0 : i32
    return %arg0, %c0_i32, %c0_i32_0 : i32, i32, i32
  }
  func.func @transform_1(%arg0: i32) -> (i32, i32) {
    %c0_i32 = arith.constant 0 : i32
    %c0_i32_0 = arith.constant 0 : i32
    %c0_i32_1 = arith.constant 0 : i32
    return %c0_i32, %c0_i32_0 : i32, i32
  }
  func.func @transform_2(%arg0: i32) -> (i32, i32) {
    %c0_i32 = arith.constant 0 : i32
    %c0_i32_0 = arith.constant 0 : i32
    %c0_i32_1 = arith.constant 0 : i32
    return %c0_i32, %c0_i32_0 : i32, i32
  }
  func.func @transform_3(%arg0: i32) -> (i32, i32, i32) {
    %c0_i32 = arith.constant 0 : i32
    %c0_i32_0 = arith.constant 0 : i32
    %c0_i32_1 = arith.constant 0 : i32
    return %arg0, %c0_i32, %c0_i32_0 : i32, i32, i32
  }
}

</mosaic_0001>

<llo_original>
// kernel: tpu_custom_call.1
$region0: #{tpu_custom_call.1}
  #allocation0 [shape = 'u32[]', space=smem, size = 0x4, offset = 0x4, fixed_abs, tag = 'smem constant byte address 0x4 - core index']
  #allocation1 [shape = 'u32[72,128]{1,0:T(1,128)}', space=vmem, size = 0x9000, scoped, tag = 'internal scratch']
  %s0 = inlined_call_operand.hbm [shape: f32[4,32,64], index: 0, kind: input, shape index: {}]
  %s1 = inlined_call_operand.vmem [shape: f32[32,8], index: 1, kind: input, shape index: {}]
  %s2 = inlined_call_operand.vmem [shape: f32[8,32], index: 2, kind: input, shape index: {}]
  %s3 = inlined_call_operand.hbm [shape: f32[4,32,64], index: 3, kind: output, shape index: {}]
  %s4 = sld [smem:[#allocation0]]
  $region49: #{tpu_custom_call.1} parent=0
    _
  %s6 = ssub.s32 1, %s4
  %s7 = scalar_select 0, %s6, %s4
  $region1: #{tpu_custom_call.1} parent=0
    #allocation2 [shape = 'u8[65536]{0}', space=vmem, size = 0x10000, scoped, tag = 'input window, operand 0']
    #allocation3 [shape = 's32[2]{0}', space=sflag, size = 0x8, scoped, tag = 'scoped memory for tpu_custom_call.1']
    #allocation4 [shape = 's32[2]{0}', space=sflag, size = 0x8, scoped, tag = 'scoped memory for tpu_custom_call.1']
    #allocation5 [shape = 'u8[65536]{0}', space=vmem, size = 0x10000, scoped, tag = 'output window, operand 0']
    %8 = vsyncpa [#allocation3], 0
    %s9 = scalar_lea.sflag [#allocation3], 1
    %10 = vsyncpa %s9, 0
    %11 = vsyncpa [#allocation4], 0
    %s12 = scalar_lea.sflag [#allocation4], 1
    %13 = vsyncpa %s12, 0
    loop: start=0, step=1, limit=4
    $region2: #{tpu_custom_call.1} parent=1 // loop_pre_header
      _
    $region3: #{tpu_custom_call.1} parent=1 // loop_header
      %s15 = sphi 0, %s19
      %p16 = scmp.ge.s32.totalorder %s15, 4
      %s25 = sphi 0, %s27
      %s28 = sphi 0, %s25
      %s29 = sphi 0, %s28
      %s45 = sphi 0, %s29
      %s49 = sphi 0, %s49
      %s51 = sphi 0, %s49
      %s52 = sphi 0, %s51
      %s66 = sphi 0, %s52
      %s70 = sphi 0, %s70
      %s72 = sphi 0, %s70
      %s73 = sphi 0, %s72
      %s87 = sphi 0, %s73
      %s93 = sphi 0, %s95
      %s96 = sphi 0, %s93
      %s97 = sphi 0, %s96
      %s113 = sphi 0, %s97
    $region4: #{tpu_custom_call.1} parent=1 // loop_header_branch
      %18 = sbr.rel (%p16) target = $region8
    $region5: #{tpu_custom_call.1} parent=1 // loop_body
      %s20 = ssub.s32 %s15, 1
      %s21 = ssub.s32 %s15, 2
      %s22 = sadd.s32 %s15, 1
      %s23 = ssub.s32 %s15, %s22
      %p24 = scmp.eq.s32.totalorder %s23, 0
      %s26 = sadd.s32 %s25, 1
      %s27 = scalar_select %p24, %s25, %s26
      %p30 = pneg %p24
      %p31 = scmp.eq.s32.totalorder %s15, 1
      %p32 = por %p30, %p31
      %p33 = scmp.ne.s32.totalorder %s25, %s28
      %p34 = scmp.eq.s32.totalorder %s15, 0
      %p35 = por %p33, %p34
      %p36 = scmp.ne.s32.totalorder %s25, %s28
      %p37 = scmp.eq.s32.totalorder %s20, 1
      %p38 = por %p36, %p37
      %p39 = scmp.ne.s32.totalorder %s28, %s29
      %p40 = scmp.eq.s32.totalorder %s20, 0
      %p41 = por %p39, %p40
      %p42 = scmp.ne.s32.totalorder %s28, %s29
      %p43 = scmp.eq.s32.totalorder %s21, 1
      %p44 = por %p42, %p43
      %p46 = scmp.ne.s32.totalorder %s29, %s45
      %p47 = scmp.eq.s32.totalorder %s21, 0
      %p48 = por %p46, %p47
      %s50 = sadd.s32 %s49, 1
      %p53 = scmp.eq.s32.totalorder %s15, 1
      %p54 = scmp.ne.s32.totalorder %s49, %s51
      %p55 = scmp.eq.s32.totalorder %s15, 0
      %p56 = por %p54, %p55
      %p57 = scmp.ne.s32.totalorder %s49, %s51
      %p58 = scmp.eq.s32.totalorder %s20, 1
      %p59 = por %p57, %p58
      %p60 = scmp.ne.s32.totalorder %s51, %s52
      %p61 = scmp.eq.s32.totalorder %s20, 0
      %p62 = por %p60, %p61
      %p63 = scmp.ne.s32.totalorder %s51, %s52
      %p64 = scmp.eq.s32.totalorder %s21, 1
      %p65 = por %p63, %p64
      %p67 = scmp.ne.s32.totalorder %s52, %s66
      %p68 = scmp.eq.s32.totalorder %s21, 0
      %p69 = por %p67, %p68
      %s71 = sadd.s32 %s70, 1
      %p74 = scmp.eq.s32.totalorder %s15, 1
      %p75 = scmp.ne.s32.totalorder %s70, %s72
      %p76 = scmp.eq.s32.totalorder %s15, 0
      %p77 = por %p75, %p76
      %p78 = scmp.ne.s32.totalorder %s70, %s72
      %p79 = scmp.eq.s32.totalorder %s20, 1
      %p80 = por %p78, %p79
      %p81 = scmp.ne.s32.totalorder %s72, %s73
      %p82 = scmp.eq.s32.totalorder %s20, 0
      %p83 = por %p81, %p82
      %p84 = scmp.ne.s32.totalorder %s72, %s73
      %p85 = scmp.eq.s32.totalorder %s21, 1
      %p86 = por %p84, %p85
      %p88 = scmp.ne.s32.totalorder %s73, %s87
      %p89 = scmp.eq.s32.totalorder %s21, 0
      %p90 = por %p88, %p89
      %s91 = ssub.s32 %s15, %s22
      %p92 = scmp.eq.s32.totalorder %s91, 0
      %s94 = sadd.s32 %s93, 1
      %s95 = scalar_select %p92, %s93, %s94
      %p98 = pneg %p92
      %p99 = scmp.eq.s32.totalorder %s15, 1
      %p100 = por %p98, %p99
      %p101 = scmp.ne.s32.totalorder %s93, %s96
      %p102 = scmp.eq.s32.totalorder %s15, 0
      %p103 = por %p101, %p102
      %p104 = scmp.ne.s32.totalorder %s93, %s96
      %p105 = scmp.eq.s32.totalorder %s20, 1
      %p106 = por %p104, %p105
      %p107 = scmp.ne.s32.totalorder %s96, %s97
      %p108 = scmp.eq.s32.totalorder %s20, 0
      %p109 = por %p107, %p108
      %p110 = scmp.ne.s32.totalorder %s96, %s97
      %p111 = scmp.eq.s32.totalorder %s21, 1
      %p112 = por %p110, %p111
      %p114 = scmp.ne.s32.totalorder %s97, %s113
      %p115 = scmp.eq.s32.totalorder %s21, 0
      %p116 = por %p114, %p115
      %p117 = scmp.le.s32.totalorder 1, %s15
      %p118 = scmp.lt.s32.totalorder %s15, 3
      %p119 = pnand %p117, %p118
      %p120 = pneg %p119
      // Predicated region
      $region9: #{tpu_custom_call.1} parent=5 // pred_check
        _
      $region10: #{tpu_custom_call.1} parent=5 // pred_check_branch
        %122 = sbr.rel (%p119) target = $region12
      $region11: #{tpu_custom_call.1} parent=5 // pred_region
        %s123 = ssub.s32 %s15, 1
        // Predicated region
        $region13: #{tpu_custom_call.1} parent=11 // pred_check
          %p124 = pneg %p62
        $region14: #{tpu_custom_call.1} parent=11 // pred_check_branch
          %126 = sbr.rel (%p124) target = $region16
        $region15: #{tpu_custom_call.1} parent=11 // pred_region
          _
        $region16: #{tpu_custom_call.1} parent=11 // pred_fallthru
          _
        // Predicated region
        $region17: #{tpu_custom_call.1} parent=11 // pred_check
          %p127 = pneg %p83
        $region18: #{tpu_custom_call.1} parent=11 // pred_check_branch
          %129 = sbr.rel (%p127) target = $region20
        $region19: #{tpu_custom_call.1} parent=11 // pred_region
          _
        $region20: #{tpu_custom_call.1} parent=11 // pred_fallthru
          _
      $region12: #{tpu_custom_call.1} parent=5 // pred_fallthru
        _
      %p130 = scmp.lt.s32.totalorder %s15, 2
      // Predicated region
      $region21: #{tpu_custom_call.1} parent=5 // pred_check
        %p131 = pneg %p130
      $region22: #{tpu_custom_call.1} parent=5 // pred_check_branch
        %133 = sbr.rel (%p131) target = $region24
      $region23: #{tpu_custom_call.1} parent=5 // pred_region
        // Predicated region
        $region25: #{tpu_custom_call.1} parent=23 // pred_check
          %p134 = pneg %p35
        $region26: #{tpu_custom_call.1} parent=23 // pred_check_branch
          %136 = sbr.rel (%p134) target = $region28
        $region27: #{tpu_custom_call.1} parent=23 // pred_region
          %s137 = sand.u32 %s25, 1
          %s138 = scalar_lea.sflag [#allocation3], %s137
          %s139 = sand.u32 %s25, 1
          %s140 = smul.addr %s139, 64
          %s141 = scalar_lea.vmem [#allocation2], %s140
          %s142 = smul.u32 2, %s15
          %144 = vsyncadd %s138, 0
          %s145 = smul.addr %s142, 4
          %s146 = smul.addr %s145, 8
          %s147 = scalar_lea.hbm %s0, %s146
          %s148 = sshll.u32 %s147, 4
          %s149 = int_to_ptr.hbm [resolvable:$true] %s148
          %s150 = sshll.u32 %s141, 4
          %s151 = int_to_ptr.vmem [resolvable:$true] %s150
          %156 = dma.hbm_to_vmem [thread:$0]  %s149, 1024, %s151, %s138, 128, 128, 8
        $region28: #{tpu_custom_call.1} parent=23 // pred_fallthru
          _
      $region24: #{tpu_custom_call.1} parent=5 // pred_fallthru
        _
      %p157 = scmp.le.s32.totalorder 1, %s15
      %p158 = scmp.lt.s32.totalorder %s15, 3
      %p159 = pnand %p157, %p158
      %p160 = pneg %p159
      // Predicated region
      $region29: #{tpu_custom_call.1} parent=5 // pred_check
        _
      $region30: #{tpu_custom_call.1} parent=5 // pred_check_branch
        %162 = sbr.rel (%p159) target = $region32
      $region31: #{tpu_custom_call.1} parent=5 // pred_region
        %s163 = ssub.s32 %s15, 1
        %s164 = sand.u32 %s28, 1
        %s165 = scalar_lea.sflag [#allocation3], %s164
        %s166 = sand.u32 %s28, 1
        %s167 = smul.addr %s166, 64
        %s168 = scalar_lea.vmem [#allocation2], %s167
        // Predicated region
        $region33: #{tpu_custom_call.1} parent=31 // pred_check
          %p169 = pneg %p41
        $region34: #{tpu_custom_call.1} parent=31 // pred_check_branch
          %171 = sbr.rel (%p169) target = $region36
        $region35: #{tpu_custom_call.1} parent=31 // pred_region
          %173 = dma.done %s165, 1024
        $region36: #{tpu_custom_call.1} parent=31 // pred_fallthru
          _
        %s174 = sand.u32 %s28, 1
        %s175 = scalar_lea.sflag [#allocation3], %s174
        %s176 = sand.u32 %s28, 1
        %s177 = smul.addr %s176, 64
        %s178 = scalar_lea.vmem [#allocation2], %s177
        %p179 = pneg %p41
        %p180 = pneg %p38
        %p181 = pneg %p62
        %p182 = pneg %p59
        %p183 = pneg %p83
        %p184 = pneg %p80
        %p185 = pneg %p109
        %p186 = pneg %p106
        %s187 = sand.u32 %s96, 1
        %s188 = scalar_lea.sflag [#allocation4], %s187
        %s189 = sand.u32 %s96, 1
        %s190 = smul.addr %s189, 64
        %s191 = scalar_lea.vmem [#allocation5], %s190
        %s192 = smul.u32 2, %s20
        %s193 = smul.u32 2, %s20
        %v194 = vld [vmem:[%s168] sm:$0xff]
        %v195 = vld [vmem:[%s168 + $0x8] sm:$0xff]
        %v196 = vld [vmem:[%s168 + $0x10] sm:$0xff]
        %v197 = vld [vmem:[%s168 + $0x18] sm:$0xff]
        %v198 = vld [vmem:[%s168 + $0x20] sm:$0xff]
        %v199 = vld [vmem:[%s168 + $0x28] sm:$0xff]
        %v200 = vld [vmem:[%s168 + $0x30] sm:$0xff]
        %v201 = vld [vmem:[%s168 + $0x38] sm:$0xff]
        %vm202 = vcmask 523264
        %v203 = vsel %vm202, %v194, 0.0
        %204 = vadd.xlane.f32.xlu0 %v203
        %v205 = vpop.xlane.xlu0 %204
        %v206 = vsel %vm202, %v195, 0.0
        %207 = vadd.xlane.f32.xlu0 %v206
        %v208 = vpop.xlane.xlu0 %207
        %v209 = vsel %vm202, %v196, 0.0
        %210 = vadd.xlane.f32.xlu0 %v209
        %v211 = vpop.xlane.xlu0 %210
        %v212 = vsel %vm202, %v197, 0.0
        %213 = vadd.xlane.f32.xlu0 %v212
        %v214 = vpop.xlane.xlu0 %213
        %v215 = vsel %vm202, %v198, 0.0
        %216 = vadd.xlane.f32.xlu0 %v215
        %v217 = vpop.xlane.xlu0 %216
        %v218 = vsel %vm202, %v199, 0.0
        %219 = vadd.xlane.f32.xlu0 %v218
        %v220 = vpop.xlane.xlu0 %219
        %v221 = vsel %vm202, %v200, 0.0
        %222 = vadd.xlane.f32.xlu0 %v221
        %v223 = vpop.xlane.xlu0 %222
        %v224 = vsel %vm202, %v201, 0.0
        %225 = vadd.xlane.f32.xlu0 %v224
        %v226 = vpop.xlane.xlu0 %225
        %v227 = vmul.f32 %v205, 0.015625
        %v228 = vmul.f32 %v208, 0.015625
        %v229 = vmul.f32 %v211, 0.015625
        %v230 = vmul.f32 %v214, 0.015625
        %v231 = vmul.f32 %v217, 0.015625
        %v232 = vmul.f32 %v220, 0.015625
        %v233 = vmul.f32 %v223, 0.015625
        %v234 = vmul.f32 %v226, 0.015625
        %v235 = vld [vmem:[%s1] sm:$0xff]
        %v236 = vld [vmem:[%s1 + $0x8] sm:$0xff]
        %v237 = vld [vmem:[%s1 + $0x10] sm:$0xff]
        %v238 = vld [vmem:[%s1 + $0x18] sm:$0xff]
        %v247 = vlaneseq
        %v248 = vand.u32 %v247, 127
        %v249 = vperm.slane %v227, %v248
        %v250 = vadd.s32 %v248, 4294967288
        %v251 = vperm.slane %v228, %v250
        %vm252 = vcmask 130112
        %v253 = vsel %vm252, %v251, %v249
        %v254 = vadd.s32 %v248, 4294967280
        %v255 = vperm.slane %v229, %v254
        %vm256 = vcmask 195712
        %v257 = vsel %vm256, %v255, %v253
        %v258 = vadd.s32 %v248, 4294967272
        %v259 = vperm.slane %v230, %v258
        %vm260 = vcmask 261312
        %v261 = vsel %vm260, %v259, %v257
        %v262 = vperm.slane %v231, %v248
        %v263 = vperm.slane %v232, %v250
        %v264 = vsel %vm252, %v263, %v262
        %v265 = vperm.slane %v233, %v254
        %v266 = vsel %vm256, %v265, %v264
        %v267 = vperm.slane %v234, %v258
        %v268 = vsel %vm260, %v267, %v266
        %vm269 = vcmask 1041409
        %v270 = vsel %vm269, %v268, %v261
        %vm271 = vcmask 261120
        %v272 = vsel %vm271, %v270, 0
        %274 = vmatpush.msra.mxu0 0.0
        %275 = vmatpush.msra.mxu0 0.0
        %276 = vmatpush.msra.mxu0 0.0
        %277 = vmatpush.msra.mxu0 0.0
        %278 = vmatpush.msra.mxu0 0.0
        %279 = vmatpush.msra.mxu0 0.0
        %280 = vmatpush.msra.mxu0 0.0
        %281 = vmatpush.msra.mxu0 0.0
        %282 = vmatpush.msra.mxu0 0.0
        %283 = vmatpush.msra.mxu0 0.0
        %284 = vmatpush.msra.mxu0 0.0
        %285 = vmatpush.msra.mxu0 0.0
        %286 = vmatpush.msra.mxu0 %v238
        %287 = vmatpush.msra.mxu0 %v237
        %288 = vmatpush.msra.mxu0 %v236
        %289 = vmatpush.msra.mxu0 %v235
        %290 = vmatmul.f32.gmra.mxu0 %v272
        %v291 = vpop.f32.mrf.mxu0
        %v292 = vadd.f32 0.0, %v291
        %293 = vdwg.mxu0
        %v294 = vmax.f32 %v292, 0.0
        %v295 = vld [vmem:[%s2] sm:$0xff]
        %vm296 = vcmask 64512
        %v298 = vsel %vm296, %v294, 0
        %300 = vmatpush.msra.mxu0 0.0
        %301 = vmatpush.msra.mxu0 0.0
        %302 = vmatpush.msra.mxu0 0.0
        %303 = vmatpush.msra.mxu0 0.0
        %304 = vmatpush.msra.mxu0 0.0
        %305 = vmatpush.msra.mxu0 0.0
        %306 = vmatpush.msra.mxu0 0.0
        %307 = vmatpush.msra.mxu0 0.0
        %308 = vmatpush.msra.mxu0 0.0
        %309 = vmatpush.msra.mxu0 0.0
        %310 = vmatpush.msra.mxu0 0.0
        %311 = vmatpush.msra.mxu0 0.0
        %312 = vmatpush.msra.mxu0 0.0
        %313 = vmatpush.msra.mxu0 0.0
        %314 = vmatpush.msra.mxu0 0.0
        %315 = vmatpush.msra.mxu0 %v295
        %316 = vmatmul.f32.gmra.mxu0 %v298
        %v317 = vpop.f32.mrf.mxu0
        %v318 = vadd.f32 3.0, %v317
        %319 = vdwg.mxu0
        %v320 = vmax.f32 %v318, 0.0
        %v321 = vmin.f32 %v320, 6.0
        %v322 = vmul.f32 %v321, 0.16666667
        %v323 = vperm.slane %v322, 0
        %v324 = vlaneseq
        %v325 = vshrl.u32 %v324, 7
        %327 = vset.pattern.permute.xlu0 %v325
        %328 = vperm.xlu0 %327, %v323
        %v329 = vpop.permute.xlu0 %328
        %v330 = vlaneseq
        %v331 = vshrl.u32 %v330, 7
        %v332 = vadd.s32 %v331, 8
        %333 = vset.pattern.permute.xlu0 %v332
        %334 = vperm.xlu0 %333, %v323
        %v335 = vpop.permute.xlu0 %334
        %v336 = vlaneseq
        %v337 = vshrl.u32 %v336, 7
        %v338 = vadd.s32 %v337, 16
        %339 = vset.pattern.permute.xlu0 %v338
        %340 = vperm.xlu0 %339, %v323
        %v341 = vpop.permute.xlu0 %340
        %v342 = vlaneseq
        %v343 = vshrl.u32 %v342, 7
        %v344 = vadd.s32 %v343, 24
        %345 = vset.pattern.permute.xlu0 %v344
        %346 = vperm.xlu0 %345, %v323
        %v347 = vpop.permute.xlu0 %346
        %v348 = vperm.slane %v322, 1
        %v349 = vlaneseq
        %v350 = vshrl.u32 %v349, 7
        %352 = vset.pattern.permute.xlu0 %v350
        %353 = vperm.xlu0 %352, %v348
        %v354 = vpop.permute.xlu0 %353
        %v355 = vlaneseq
        %v356 = vshrl.u32 %v355, 7
        %v357 = vadd.s32 %v356, 8
        %358 = vset.pattern.permute.xlu0 %v357
        %359 = vperm.xlu0 %358, %v348
        %v360 = vpop.permute.xlu0 %359
        %v361 = vlaneseq
        %v362 = vshrl.u32 %v361, 7
        %v363 = vadd.s32 %v362, 16
        %364 = vset.pattern.permute.xlu0 %v363
        %365 = vperm.xlu0 %364, %v348
        %v366 = vpop.permute.xlu0 %365
        %v367 = vlaneseq
        %v368 = vshrl.u32 %v367, 7
        %v369 = vadd.s32 %v368, 24
        %370 = vset.pattern.permute.xlu0 %v369
        %371 = vperm.xlu0 %370, %v348
        %v372 = vpop.permute.xlu0 %371
        %v373 = vmul.f32 %v194, %v329
        %v374 = vmul.f32 %v195, %v335
        %v375 = vmul.f32 %v196, %v341
        %v376 = vmul.f32 %v197, %v347
        %v377 = vmul.f32 %v198, %v354
        %v378 = vmul.f32 %v199, %v360
        %v379 = vmul.f32 %v200, %v366
        %v380 = vmul.f32 %v201, %v372
        %381 = vst.msk [vmem:[%s191] sm:$0xff] %vm202, %v373
        %382 = vst.msk [vmem:[%s191 + $0x8] sm:$0xff] %vm202, %v374
        %383 = vst.msk [vmem:[%s191 + $0x10] sm:$0xff] %vm202, %v375
        %384 = vst.msk [vmem:[%s191 + $0x18] sm:$0xff] %vm202, %v376
        %385 = vst.msk [vmem:[%s191 + $0x20] sm:$0xff] %vm202, %v377
        %386 = vst.msk [vmem:[%s191 + $0x28] sm:$0xff] %vm202, %v378
        %387 = vst.msk [vmem:[%s191 + $0x30] sm:$0xff] %vm202, %v379
        %388 = vst.msk [vmem:[%s191 + $0x38] sm:$0xff] %vm202, %v380
        %s389 = sand.u32 %s96, 1
        %s390 = scalar_lea.sflag [#allocation4], %s389
        %s391 = sand.u32 %s96, 1
        %s392 = smul.addr %s391, 64
        %s393 = scalar_lea.vmem [#allocation5], %s392
        // Predicated region
        $region37: #{tpu_custom_call.1} parent=31 // pred_check
          %p394 = pneg %p106
        $region38: #{tpu_custom_call.1} parent=31 // pred_check_branch
          %396 = sbr.rel (%p394) target = $region40
        $region39: #{tpu_custom_call.1} parent=31 // pred_region
          %s397 = smul.u32 2, %s20
          %399 = vsyncadd %s390, 0
          %s400 = smul.addr %s397, 4
          %s401 = smul.addr %s400, 8
          %s402 = scalar_lea.hbm %s3, %s401
          %s403 = sshll.u32 %s393, 4
          %s404 = int_to_ptr.vmem [resolvable:$true] %s403
          %s405 = sshll.u32 %s402, 4
          %s406 = int_to_ptr.hbm [resolvable:$true] %s405
          %411 = dma.vmem_to_hbm [thread:$0]  %s404, 1024, %s406, %s390, 128, 128, 8
        $region40: #{tpu_custom_call.1} parent=31 // pred_fallthru
          _
      $region32: #{tpu_custom_call.1} parent=5 // pred_fallthru
        _
      %p412 = scmp.le.s32.totalorder 2, %s15
      // Predicated region
      $region41: #{tpu_custom_call.1} parent=5 // pred_check
        %p413 = pneg %p412
      $region42: #{tpu_custom_call.1} parent=5 // pred_check_branch
        %415 = sbr.rel (%p413) target = $region44
      $region43: #{tpu_custom_call.1} parent=5 // pred_region
        %s416 = ssub.s32 %s15, 2
        // Predicated region
        $region45: #{tpu_custom_call.1} parent=43 // pred_check
          %p417 = pneg %p112
        $region46: #{tpu_custom_call.1} parent=43 // pred_check_branch
          %419 = sbr.rel (%p417) target = $region48
        $region47: #{tpu_custom_call.1} parent=43 // pred_region
          %s420 = sand.u32 %s97, 1
          %s421 = scalar_lea.sflag [#allocation4], %s420
          %s422 = sand.u32 %s97, 1
          %s423 = smul.addr %s422, 64
          %s424 = scalar_lea.vmem [#allocation5], %s423
          %426 = dma.done %s421, 1024
        $region48: #{tpu_custom_call.1} parent=43 // pred_fallthru
          _
      $region44: #{tpu_custom_call.1} parent=5 // pred_fallthru
        _
    $region6: #{tpu_custom_call.1} parent=1 // loop_footer
      %s19 = sadd.s32 1, %s15
    $region7: #{tpu_custom_call.1} parent=1 // loop_footer_branch
      %14 = sbr.rel target = $region3
    $region8: #{tpu_custom_call.1} parent=1 // loop_exit
      _
    %427 = vsyncpa [#allocation3], 1
    %s428 = scalar_lea.sflag [#allocation3], 1
    %429 = vsyncpa %s428, 1
    %430 = vsyncpa [#allocation4], 1
    %s431 = scalar_lea.sflag [#allocation4], 1
    %432 = vsyncpa %s431, 1

</llo_original>
